<compile_context>
chip_gen: v5e
topology: v5e:2x2
jax: 0.10.0
libtpu: 0.0.40
codegen_flags: <defaults>
</compile_context>

<pallas_src>
import functools

import jax
import jax.numpy as jnp
from jax.experimental import pallas as pl
from jax.experimental.pallas import tpu as pltpu


def _round_up(n, m):
    return ((n + m - 1) // m) * m


def _vmem_capacity_bytes():
    """Physical VMEM bytes for this chip, conservative fallback if the query is unavailable."""
    try:
        info = pltpu.get_tpu_info()
        cap = getattr(info, "vmem_capacity_bytes", None)
        if cap:
            return int(cap)
    except Exception:
        pass
    return 64 << 20   # conservative: v7x per-TensorCore VMEM; also safe on v5e/v6e


def _invariant_spec(block_shape):
    """Grid-invariant operand: single-buffer it (no prefetch needed) when supported."""
    index_map = lambda i: (0, 0)
    try:
        return pl.BlockSpec(block_shape, index_map, pipeline_mode=pl.Buffered(1))
    except (AttributeError, TypeError):
        # Older JAX without pipeline_mode / Buffered: fall back to the default double buffer.
        return pl.BlockSpec(block_shape, index_map)


def _pick_tm(m, cin_v_pad, cout_v_pad, *, x_bytes, h_bytes, out_bytes, vmem_budget):
    """Largest block-row count whose blocks + resident operands fit the VMEM budget."""
    # Resident operands: bf16 fused B (single-buffered) + f32 bias row.
    resident = cin_v_pad * cout_v_pad * 2 + cout_v_pad * 4
    # Streamed blocks are double-buffered (x, h0, out); in-kernel f32 temporaries
    # (z accumulator, h0 upcast, out staging) cost ~3 extra f32 rows of width cout_v_pad.
    per_row = (2 * (cin_v_pad * x_bytes + cout_v_pad * h_bytes + cout_v_pad * out_bytes)
               + 3 * cout_v_pad * 4)
    avail = max(vmem_budget - resident, 8 * per_row)
    tm = avail // max(per_row, 1)
    tm = min(int(tm), 1024)
    # Keep >= 4 grid steps when M allows (>= 2 blocks per v7x TensorCore; also gives the
    # single-core chips something to pipeline against). Per-step overhead (~0.35us) is noise.
    tm = min(tm, max(8, pl.cdiv(m, 4)))
    tm = max(8, (tm // 8) * 8)          # sublane alignment
    return int(tm)


def _tgcn_fused_kernel(x_ref, b_ref, bias_ref, h0_ref, o_ref, *, alpha):
    """One grid step: out = X @ B + bias + alpha * H0 for a (tm, Cout*V_pad) block.

    x_ref, b_ref, h0_ref are bf16 (MXU-native / half DMA bytes); B and bias already carry
    the (1-alpha) factor. Accumulation and the elementwise tail are f32.
    """
    z = jnp.dot(x_ref[...], b_ref[...], preferred_element_type=jnp.float32)  # MXU, f32 acc
    z = z + bias_ref[...]                                                    # (1, W) broadcast
    out = z + alpha * h0_ref[...].astype(jnp.float32)
    o_ref[...] = out.astype(o_ref.dtype)


def conv_temporal_graphical(x, A, h0, weight, bias, *, alpha=0.1, tm=None, out_dtype=None):
    """Pallas implementation of ConvTemporalGraphical.forward (t_kernel_size=1, Cin==Cout).

    x      : (N, C_in, T, V)  float32
    A      : (K, V, V)        float32
    h0     : (N, C_out, T, V) float32  (shift is identity since C_in == C_out)
    weight : (K*C_out, C_in)  1x1 conv weight (flattened from (K*C_out, C_in, 1, 1))
    bias   : (K*C_out,)
    returns (out (N, C_out, T, V), A, h0)
    """
    N, C_in, T, V = x.shape
    K = A.shape[0]
    C_out = weight.shape[0] // K
    assert weight.shape[0] == K * C_out
    assert C_in == C_out, "identity-shift configuration only (in_channels == out_channels)"

    M = N * T
    cin_v = C_in * V
    cout_v = C_out * V
    cin_v_pad = _round_up(cin_v, 128)     # lane-dense matmul K dim
    cout_v_pad = _round_up(cout_v, 128)   # lane-dense output / unmasked vst

    one_m_alpha = 1.0 - float(alpha)
    # TODO(synk): set out_dtype=jnp.bfloat16 if downstream tolerates it (halves writeback,
    # biggest remaining store-side win on v5e).
    out_dtype = x.dtype if out_dtype is None else out_dtype

    # --- Wrapper-side fusion of W, A, bias and the (1-alpha) scale (tiny tensors) ---------
    w_k = weight.reshape(K, C_out, C_in).astype(jnp.float32)
    b_k = bias.reshape(K, C_out).astype(jnp.float32)
    a_f = A.astype(jnp.float32)
    # B[(i,v),(c,w)] = (1-a) * sum_k W[k,c,i] * A[k,v,w];  bf16, zero-padded to lane multiples.
    B = jnp.einsum('kci,kvw->ivcw', w_k, a_f).reshape(cin_v, cout_v) * one_m_alpha
    B = jnp.pad(B, ((0, cin_v_pad - cin_v), (0, cout_v_pad - cout_v))).astype(jnp.bfloat16)
    # bias_eff[c,w] = (1-a) * sum_k b[k,c] * sum_v A[k,v,w];  stays f32 (added post-matmul).
    bias_eff = jnp.einsum('kc,kw->cw', b_k, a_f.sum(axis=1)).reshape(1, cout_v) * one_m_alpha
    bias_eff = jnp.pad(bias_eff, ((0, 0), (0, cout_v_pad - cout_v)))

    # --- Layout plumbing: (N, C, T, V) -> (M, C*V_pad), streamed in bf16 -------------------
    # Transpose + reshape + lane-pad + bf16 cast form one wrapper pass per tensor; no row
    # padding (ragged tail handled by Pallas's masked edge blocks).
    x_k = jnp.transpose(x, (0, 2, 1, 3)).reshape(M, cin_v)
    h0_k = jnp.transpose(h0, (0, 2, 1, 3)).reshape(M, cout_v)
    x_k = jnp.pad(x_k, ((0, 0), (0, cin_v_pad - cin_v))).astype(jnp.bfloat16)
    h0_k = jnp.pad(h0_k, ((0, 0), (0, cout_v_pad - cout_v))).astype(jnp.bfloat16)

    # --- Tiling / VMEM accounting ----------------------------------------------------------
    vmem_cap = _vmem_capacity_bytes()
    vmem_budget = int(vmem_cap * 0.85)
    if tm is None:
        tm = _pick_tm(M, cin_v_pad, cout_v_pad,
                      x_bytes=2, h_bytes=2, out_bytes=jnp.dtype(out_dtype).itemsize,
                      vmem_budget=vmem_budget)
    grid_m = pl.cdiv(M, tm)

    kernel = functools.partial(_tgcn_fused_kernel, alpha=float(alpha))

    out_k = pl.pallas_call(
        kernel,
        out_shape=jax.ShapeDtypeStruct((M, cout_v_pad), out_dtype),
        grid_spec=pltpu.PrefetchScalarGridSpec(
            num_scalar_prefetch=0,
            grid=(grid_m,),
            in_specs=[
                pl.BlockSpec((tm, cin_v_pad), lambda i: (i, 0)),    # X block   (streamed bf16)
                _invariant_spec((cin_v_pad, cout_v_pad)),           # fused B   (resident bf16)
                _invariant_spec((1, cout_v_pad)),                   # bias_eff  (resident f32)
                pl.BlockSpec((tm, cout_v_pad), lambda i: (i, 0)),   # H0 block  (streamed bf16)
            ],
            out_specs=pl.BlockSpec((tm, cout_v_pad), lambda i: (i, 0)),
        ),
        compiler_params=pltpu.CompilerParams(
            dimension_semantics=("parallel",),
            vmem_limit_bytes=int(vmem_cap * 0.9),
        ),
    )(x_k, B, bias_eff, h0_k)

    # Drop padded lanes (exact zeros), restore (N, C, T, V).
    out = jnp.transpose(out_k[:, :cout_v].reshape(N, T, C_out, V), (0, 2, 1, 3))
    return out, A, h0


def _reference(x, A, h0, weight, bias, alpha):
    """Pure-JAX reference mirroring the PyTorch forward."""
    N, C_in, T, V = x.shape
    K = A.shape[0]
    C_out = weight.shape[0] // K
    y = jnp.einsum('oc,nctv->notv', weight, x) + bias[None, :, None, None]
    y = y.reshape(N, K, C_out, T, V)
    z = jnp.einsum('nkctv,kvw->nctw', y, A)
    return (1.0 - alpha) * z + alpha * h0


if __name__ == "__main__":
    # Small shapes consistent with the module: N=2, C_in=C_out=4, T=8, V=16, K=3.
    N, C, T, V, K = 2, 4, 8, 16, 3
    alpha = 0.1

    key = jax.random.PRNGKey(0)
    kx, ka, kh, kw, kb = jax.random.split(key, 5)

    x = jax.random.normal(kx, (N, C, T, V), dtype=jnp.float32)
    A = jax.random.normal(ka, (K, V, V), dtype=jnp.float32) * 0.2
    h0 = jax.random.normal(kh, (N, C, T, V), dtype=jnp.float32)
    # Conv2d(C, K*C, kernel=(1,1)) parameters, initialized deterministically.
    weight = jax.random.normal(kw, (K * C, C), dtype=jnp.float32) * 0.1
    bias = jax.random.normal(kb, (K * C,), dtype=jnp.float32) * 0.1

    out, A_out, h0_out = conv_temporal_graphical(x, A, h0, weight, bias, alpha=alpha)
    out = jax.block_until_ready(out)

    ref = _reference(x, A, h0, weight, bias, alpha)
    assert out.shape == (N, C, T, V)
    # bf16 streamed inputs / bf16 fused operator with f32 accumulation -> loose tolerance.
    assert jnp.allclose(out, ref, atol=2e-2, rtol=2e-2), "Pallas result mismatch vs reference"
    assert jnp.array_equal(A_out, A) and jnp.array_equal(h0_out, h0)

    print("KERNEL_OK")
</pallas_src>

<mosaic_0001>
module attributes {stable_mosaic.version = 11 : i64} {
  func.func @_tgcn_fused_kernel(%arg0: i32, %arg1: memref<8x128xbf16, #tpu.memory_space<vmem>>, %arg2: memref<128x128xbf16, #tpu.memory_space<vmem>>, %arg3: memref<1x128xf32, #tpu.memory_space<vmem>>, %arg4: memref<8x128xbf16, #tpu.memory_space<vmem>>, %arg5: memref<8x128xf32, #tpu.memory_space<vmem>>) attributes {dimension_semantics = [#tpu.dimension_semantics<parallel>], iteration_bounds = array<i64: 2>, scalar_prefetch = 0 : i64, scratch_operands = 0 : i64, tpu.core_type = #tpu.core_type<tc>, window_params = [{transform_indices = @transform_0, window_bounds = array<i64: 8, 128>}, {pipeline_mode = #tpu.pipeline_mode<synchronous>, transform_indices = @transform_1, window_bounds = array<i64: 128, 128>}, {pipeline_mode = #tpu.pipeline_mode<synchronous>, transform_indices = @transform_2, window_bounds = array<i64: 1, 128>}, {transform_indices = @transform_3, window_bounds = array<i64: 8, 128>}, {transform_indices = @transform_4, window_bounds = array<i64: 8, 128>}]} {
    %c0 = arith.constant 0 : index
    %c0_0 = arith.constant 0 : index
    %0 = vector.load %arg1[%c0, %c0_0] : memref<8x128xbf16, #tpu.memory_space<vmem>>, vector<8x128xbf16>
    %c0_1 = arith.constant 0 : index
    %c0_2 = arith.constant 0 : index
    %1 = vector.load %arg2[%c0_1, %c0_2] : memref<128x128xbf16, #tpu.memory_space<vmem>>, vector<128x128xbf16>
    %cst = arith.constant dense<0.000000e+00> : vector<8x128xf32>
    %2 = tpu.matmul %0, %1, %cst {dimension_numbers = #tpu.dot_dimension_numbers<[1], [0], [0], [1], [0, 0, 1, 1], [], []>} : vector<8x128xbf16>, vector<128x128xbf16>, vector<8x128xf32> -> vector<8x128xf32>
    %c0_3 = arith.constant 0 : index
    %c0_4 = arith.constant 0 : index
    %3 = vector.load %arg3[%c0_3, %c0_4] : memref<1x128xf32, #tpu.memory_space<vmem>>, vector<1x128xf32>
    %4 = vector.broadcast %3 : vector<1x128xf32> to vector<8x128xf32>
    %5 = arith.addf %2, %4 : vector<8x128xf32>
    %c0_5 = arith.constant 0 : index
    %c0_6 = arith.constant 0 : index
    %6 = vector.load %arg4[%c0_5, %c0_6] : memref<8x128xbf16, #tpu.memory_space<vmem>>, vector<8x128xbf16>
    %7 = arith.extf %6 : vector<8x128xbf16> to vector<8x128xf32>
    %cst_7 = arith.constant 1.000000e-01 : f32
    %8 = vector.broadcast %cst_7 : f32 to vector<8x128xf32>
    %9 = arith.mulf %8, %7 : vector<8x128xf32>
    %10 = arith.addf %5, %9 : vector<8x128xf32>
    %c0_8 = arith.constant 0 : index
    %c0_9 = arith.constant 0 : index
    %11 = vector.load %arg5[%c0_8, %c0_9] : memref<8x128xf32, #tpu.memory_space<vmem>>, vector<8x128xf32>
    tpu.vector_store %arg5[%c0_8, %c0_9], %10 {strides = array<i32>} : memref<8x128xf32, #tpu.memory_space<vmem>>, vector<8x128xf32>,
    return
  }
  func.func @transform_0(%arg0: i32) -> (i32, i32) {
    %c0_i32 = arith.constant 0 : i32
    %c0_i32_0 = arith.constant 0 : i32
    return %arg0, %c0_i32 : i32, i32
  }
  func.func @transform_1(%arg0: i32) -> (i32, i32) {
    %c0_i32 = arith.constant 0 : i32
    %c0_i32_0 = arith.constant 0 : i32
    %c0_i32_1 = arith.constant 0 : i32
    return %c0_i32, %c0_i32_0 : i32, i32
  }
  func.func @transform_2(%arg0: i32) -> (i32, i32) {
    %c0_i32 = arith.constant 0 : i32
    %c0_i32_0 = arith.constant 0 : i32
    %c0_i32_1 = arith.constant 0 : i32
    return %c0_i32, %c0_i32_0 : i32, i32
  }
  func.func @transform_3(%arg0: i32) -> (i32, i32) {
    %c0_i32 = arith.constant 0 : i32
    %c0_i32_0 = arith.constant 0 : i32
    return %arg0, %c0_i32 : i32, i32
  }
  func.func @transform_4(%arg0: i32) -> (i32, i32) {
    %c0_i32 = arith.constant 0 : i32
    %c0_i32_0 = arith.constant 0 : i32
    return %arg0, %c0_i32 : i32, i32
  }
}

</mosaic_0001>

<llo_original>
// kernel: tpu_custom_call.1
$region0: #{tpu_custom_call.1}
  #allocation0 [shape = 'u32[]', space=smem, size = 0x4, offset = 0x4, fixed_abs, tag = 'smem constant byte address 0x4 - core index']
  #allocation1 [shape = 'u32[72,128]{1,0:T(1,128)}', space=vmem, size = 0x9000, scoped, tag = 'internal scratch']
  %s0 = inlined_call_operand.hbm [shape: bf16[16,128], index: 0, kind: input, shape index: {}]
  %s1 = inlined_call_operand.hbm [shape: bf16[128,128], index: 1, kind: input, shape index: {}]
  %s2 = inlined_call_operand.vmem [shape: f32[1,128], index: 2, kind: input, shape index: {}]
  %s3 = inlined_call_operand.hbm [shape: bf16[16,128], index: 3, kind: input, shape index: {}]
  %s4 = inlined_call_operand.hbm [shape: f32[16,128], index: 4, kind: output, shape index: {}]
  %s5 = sld [smem:[#allocation0]]
  $region61: #{tpu_custom_call.1} parent=0
    _
  %s7 = ssub.s32 1, %s5
  %s8 = scalar_select 0, %s7, %s5
  $region1: #{tpu_custom_call.1} parent=0
    #allocation2 [shape = 'u8[4096]{0}', space=vmem, size = 0x1000, scoped, tag = 'input window, operand 0']
    #allocation3 [shape = 's32[2]{0}', space=sflag, size = 0x8, scoped, tag = 'scoped memory for tpu_custom_call.1']
    #allocation4 [shape = 's32[2]{0}', space=sflag, size = 0x8, scoped, tag = 'scoped memory for tpu_custom_call.1']
    #allocation5 [shape = 'u8[32768]{0}', space=vmem, size = 0x8000, scoped, tag = 'input window, operand 1, single buffered']
    #allocation6 [shape = 's32[1]{0}', space=sflag, size = 0x4, scoped, tag = 'scoped memory for tpu_custom_call.1']
    #allocation7 [shape = 'u8[4096]{0}', space=vmem, size = 0x1000, scoped, tag = 'input window, operand 3']
    #allocation8 [shape = 'u8[8192]{0}', space=vmem, size = 0x2000, scoped, tag = 'output window, operand 0']
    %9 = vsyncpa [#allocation3], 0
    %s10 = scalar_lea.sflag [#allocation3], 1
    %11 = vsyncpa %s10, 0
    %12 = vsyncpa [#allocation6], 0
    %13 = vsyncpa [#allocation4], 0
    %s14 = scalar_lea.sflag [#allocation4], 1
    %15 = vsyncpa %s14, 0
    loop: start=0, step=1, limit=4
    $region2: #{tpu_custom_call.1} parent=1 // loop_pre_header
      _
    $region3: #{tpu_custom_call.1} parent=1 // loop_header
      %s17 = sphi 0, %s21
      %p18 = scmp.ge.s32.totalorder %s17, 4
      %s27 = sphi 0, %s29
      %s30 = sphi 0, %s27
      %s31 = sphi 0, %s30
      %s47 = sphi 0, %s31
      %s51 = sphi 0, %s51
      %s53 = sphi 0, %s51
      %s54 = sphi 0, %s53
      %s68 = sphi 0, %s54
      %s72 = sphi 0, %s72
      %s74 = sphi 0, %s72
      %s75 = sphi 0, %s74
      %s89 = sphi 0, %s75
      %s95 = sphi 0, %s97
      %s98 = sphi 0, %s95
      %s99 = sphi 0, %s98
      %s115 = sphi 0, %s99
      %s121 = sphi 0, %s123
      %s124 = sphi 0, %s121
      %s125 = sphi 0, %s124
      %s141 = sphi 0, %s125
    $region4: #{tpu_custom_call.1} parent=1 // loop_header_branch
      %20 = sbr.rel (%p18) target = $region8
    $region5: #{tpu_custom_call.1} parent=1 // loop_body
      %s22 = ssub.s32 %s17, 1
      %s23 = ssub.s32 %s17, 2
      %s24 = sadd.s32 %s17, 1
      %s25 = ssub.s32 %s17, %s24
      %p26 = scmp.eq.s32.totalorder %s25, 0
      %s28 = sadd.s32 %s27, 1
      %s29 = scalar_select %p26, %s27, %s28
      %p32 = pneg %p26
      %p33 = scmp.eq.s32.totalorder %s17, 1
      %p34 = por %p32, %p33
      %p35 = scmp.ne.s32.totalorder %s27, %s30
      %p36 = scmp.eq.s32.totalorder %s17, 0
      %p37 = por %p35, %p36
      %p38 = scmp.ne.s32.totalorder %s27, %s30
      %p39 = scmp.eq.s32.totalorder %s22, 1
      %p40 = por %p38, %p39
      %p41 = scmp.ne.s32.totalorder %s30, %s31
      %p42 = scmp.eq.s32.totalorder %s22, 0
      %p43 = por %p41, %p42
      %p44 = scmp.ne.s32.totalorder %s30, %s31
      %p45 = scmp.eq.s32.totalorder %s23, 1
      %p46 = por %p44, %p45
      %p48 = scmp.ne.s32.totalorder %s31, %s47
      %p49 = scmp.eq.s32.totalorder %s23, 0
      %p50 = por %p48, %p49
      %s52 = sadd.s32 %s51, 1
      %p55 = scmp.eq.s32.totalorder %s17, 1
      %p56 = scmp.ne.s32.totalorder %s51, %s53
      %p57 = scmp.eq.s32.totalorder %s17, 0
      %p58 = por %p56, %p57
      %p59 = scmp.ne.s32.totalorder %s51, %s53
      %p60 = scmp.eq.s32.totalorder %s22, 1
      %p61 = por %p59, %p60
      %p62 = scmp.ne.s32.totalorder %s53, %s54
      %p63 = scmp.eq.s32.totalorder %s22, 0
      %p64 = por %p62, %p63
      %p65 = scmp.ne.s32.totalorder %s53, %s54
      %p66 = scmp.eq.s32.totalorder %s23, 1
      %p67 = por %p65, %p66
      %p69 = scmp.ne.s32.totalorder %s54, %s68
      %p70 = scmp.eq.s32.totalorder %s23, 0
      %p71 = por %p69, %p70
      %s73 = sadd.s32 %s72, 1
      %p76 = scmp.eq.s32.totalorder %s17, 1
      %p77 = scmp.ne.s32.totalorder %s72, %s74
      %p78 = scmp.eq.s32.totalorder %s17, 0
      %p79 = por %p77, %p78
      %p80 = scmp.ne.s32.totalorder %s72, %s74
      %p81 = scmp.eq.s32.totalorder %s22, 1
      %p82 = por %p80, %p81
      %p83 = scmp.ne.s32.totalorder %s74, %s75
      %p84 = scmp.eq.s32.totalorder %s22, 0
      %p85 = por %p83, %p84
      %p86 = scmp.ne.s32.totalorder %s74, %s75
      %p87 = scmp.eq.s32.totalorder %s23, 1
      %p88 = por %p86, %p87
      %p90 = scmp.ne.s32.totalorder %s75, %s89
      %p91 = scmp.eq.s32.totalorder %s23, 0
      %p92 = por %p90, %p91
      %s93 = ssub.s32 %s17, %s24
      %p94 = scmp.eq.s32.totalorder %s93, 0
      %s96 = sadd.s32 %s95, 1
      %s97 = scalar_select %p94, %s95, %s96
      %p100 = pneg %p94
      %p101 = scmp.eq.s32.totalorder %s17, 1
      %p102 = por %p100, %p101
      %p103 = scmp.ne.s32.totalorder %s95, %s98
      %p104 = scmp.eq.s32.totalorder %s17, 0
      %p105 = por %p103, %p104
      %p106 = scmp.ne.s32.totalorder %s95, %s98
      %p107 = scmp.eq.s32.totalorder %s22, 1
      %p108 = por %p106, %p107
      %p109 = scmp.ne.s32.totalorder %s98, %s99
      %p110 = scmp.eq.s32.totalorder %s22, 0
      %p111 = por %p109, %p110
      %p112 = scmp.ne.s32.totalorder %s98, %s99
      %p113 = scmp.eq.s32.totalorder %s23, 1
      %p114 = por %p112, %p113
      %p116 = scmp.ne.s32.totalorder %s99, %s115
      %p117 = scmp.eq.s32.totalorder %s23, 0
      %p118 = por %p116, %p117
      %s119 = ssub.s32 %s17, %s24
      %p120 = scmp.eq.s32.totalorder %s119, 0
      %s122 = sadd.s32 %s121, 1
      %s123 = scalar_select %p120, %s121, %s122
      %p126 = pneg %p120
      %p127 = scmp.eq.s32.totalorder %s17, 1
      %p128 = por %p126, %p127
      %p129 = scmp.ne.s32.totalorder %s121, %s124
      %p130 = scmp.eq.s32.totalorder %s17, 0
      %p131 = por %p129, %p130
      %p132 = scmp.ne.s32.totalorder %s121, %s124
      %p133 = scmp.eq.s32.totalorder %s22, 1
      %p134 = por %p132, %p133
      %p135 = scmp.ne.s32.totalorder %s124, %s125
      %p136 = scmp.eq.s32.totalorder %s22, 0
      %p137 = por %p135, %p136
      %p138 = scmp.ne.s32.totalorder %s124, %s125
      %p139 = scmp.eq.s32.totalorder %s23, 1
      %p140 = por %p138, %p139
      %p142 = scmp.ne.s32.totalorder %s125, %s141
      %p143 = scmp.eq.s32.totalorder %s23, 0
      %p144 = por %p142, %p143
      %p145 = scmp.le.s32.totalorder 1, %s17
      %p146 = scmp.lt.s32.totalorder %s17, 3
      %p147 = pnand %p145, %p146
      %p148 = pneg %p147
      // Predicated region
      $region9: #{tpu_custom_call.1} parent=5 // pred_check
        _
      $region10: #{tpu_custom_call.1} parent=5 // pred_check_branch
        %150 = sbr.rel (%p147) target = $region12
      $region11: #{tpu_custom_call.1} parent=5 // pred_region
        %s151 = ssub.s32 %s17, 1
        // Predicated region
        $region13: #{tpu_custom_call.1} parent=11 // pred_check
          %p152 = pneg %p64
        $region14: #{tpu_custom_call.1} parent=11 // pred_check_branch
          %154 = sbr.rel (%p152) target = $region16
        $region15: #{tpu_custom_call.1} parent=11 // pred_region
          %156 = vsyncadd [#allocation6], 0
          %s157 = sshll.u32 %s1, 4
          %s158 = int_to_ptr.hbm [resolvable:$true] %s157
          %s159 = sshll.u32 [#allocation5], 4
          %s160 = int_to_ptr.vmem [resolvable:$true] %s159
          %165 = dma.hbm_to_vmem [thread:$0]  %s158, 1024, %s160, [#allocation6], 64, 64, 4
        $region16: #{tpu_custom_call.1} parent=11 // pred_fallthru
          _
        // Predicated region
        $region17: #{tpu_custom_call.1} parent=11 // pred_check
          %p166 = pneg %p85
        $region18: #{tpu_custom_call.1} parent=11 // pred_check_branch
          %168 = sbr.rel (%p166) target = $region20
        $region19: #{tpu_custom_call.1} parent=11 // pred_region
          _
        $region20: #{tpu_custom_call.1} parent=11 // pred_fallthru
          _
      $region12: #{tpu_custom_call.1} parent=5 // pred_fallthru
        _
      %p169 = scmp.lt.s32.totalorder %s17, 2
      // Predicated region
      $region21: #{tpu_custom_call.1} parent=5 // pred_check
        %p170 = pneg %p169
      $region22: #{tpu_custom_call.1} parent=5 // pred_check_branch
        %172 = sbr.rel (%p170) target = $region24
      $region23: #{tpu_custom_call.1} parent=5 // pred_region
        // Predicated region
        $region25: #{tpu_custom_call.1} parent=23 // pred_check
          %p173 = pneg %p37
        $region26: #{tpu_custom_call.1} parent=23 // pred_check_branch
          %175 = sbr.rel (%p173) target = $region28
        $region27: #{tpu_custom_call.1} parent=23 // pred_region
          %s176 = sand.u32 %s17, 1
          %s177 = scalar_lea.sflag [#allocation3], %s176
          %s178 = sand.u32 %s27, 1
          %s179 = smul.addr %s178, 4
          %s180 = scalar_lea.vmem [#allocation2], %s179
          %182 = vsyncadd %s177, 0
          %s183 = smul.addr %s17, 4
          %s184 = scalar_lea.hbm %s0, %s183
          %s186 = sshll.u32 %s184, 4
          %s187 = int_to_ptr.hbm [resolvable:$true] %s186
          %s188 = sshll.u32 %s180, 4
          %s189 = int_to_ptr.vmem [resolvable:$true] %s188
          %191 = dma.hbm_to_vmem [thread:$0]  %s187, 64, %s189, %s177
        $region28: #{tpu_custom_call.1} parent=23 // pred_fallthru
          _
        // Predicated region
        $region29: #{tpu_custom_call.1} parent=23 // pred_check
          %p192 = pneg %p105
        $region30: #{tpu_custom_call.1} parent=23 // pred_check_branch
          %194 = sbr.rel (%p192) target = $region32
        $region31: #{tpu_custom_call.1} parent=23 // pred_region
          %s195 = sand.u32 %s17, 1
          %s196 = scalar_lea.sflag [#allocation3], %s195
          %s197 = sand.u32 %s95, 1
          %s198 = smul.addr %s197, 4
          %s199 = scalar_lea.vmem [#allocation7], %s198
          %201 = vsyncadd %s196, 0
          %s202 = smul.addr %s17, 4
          %s203 = scalar_lea.hbm %s3, %s202
          %s205 = sshll.u32 %s203, 4
          %s206 = int_to_ptr.hbm [resolvable:$true] %s205
          %s207 = sshll.u32 %s199, 4
          %s208 = int_to_ptr.vmem [resolvable:$true] %s207
          %210 = dma.hbm_to_vmem [thread:$0]  %s206, 64, %s208, %s196
        $region32: #{tpu_custom_call.1} parent=23 // pred_fallthru
          _
      $region24: #{tpu_custom_call.1} parent=5 // pred_fallthru
        _
      %p211 = scmp.le.s32.totalorder 1, %s17
      %p212 = scmp.lt.s32.totalorder %s17, 3
      %p213 = pnand %p211, %p212
      %p214 = pneg %p213
      // Predicated region
      $region33: #{tpu_custom_call.1} parent=5 // pred_check
        _
      $region34: #{tpu_custom_call.1} parent=5 // pred_check_branch
        %216 = sbr.rel (%p213) target = $region36
      $region35: #{tpu_custom_call.1} parent=5 // pred_region
        %s217 = ssub.s32 %s17, 1
        %s218 = sand.u32 %s22, 1
        %s219 = scalar_lea.sflag [#allocation3], %s218
        %s220 = sand.u32 %s30, 1
        %s221 = smul.addr %s220, 4
        %s222 = scalar_lea.vmem [#allocation2], %s221
        // Predicated region
        $region37: #{tpu_custom_call.1} parent=35 // pred_check
          %p223 = pneg %p43
        $region38: #{tpu_custom_call.1} parent=35 // pred_check_branch
          %225 = sbr.rel (%p223) target = $region40
        $region39: #{tpu_custom_call.1} parent=35 // pred_region
          %227 = dma.done %s219, 64
        $region40: #{tpu_custom_call.1} parent=35 // pred_fallthru
          _
        // Predicated region
        $region41: #{tpu_custom_call.1} parent=35 // pred_check
          %p228 = pneg %p64
        $region42: #{tpu_custom_call.1} parent=35 // pred_check_branch
          %230 = sbr.rel (%p228) target = $region44
        $region43: #{tpu_custom_call.1} parent=35 // pred_region
          %232 = dma.done [#allocation6], 1024
        $region44: #{tpu_custom_call.1} parent=35 // pred_fallthru
          _
        %s233 = sand.u32 %s22, 1
        %s234 = scalar_lea.sflag [#allocation3], %s233
        %s235 = sand.u32 %s98, 1
        %s236 = smul.addr %s235, 4
        %s237 = scalar_lea.vmem [#allocation7], %s236
        // Predicated region
        $region45: #{tpu_custom_call.1} parent=35 // pred_check
          %p238 = pneg %p111
        $region46: #{tpu_custom_call.1} parent=35 // pred_check_branch
          %240 = sbr.rel (%p238) target = $region48
        $region47: #{tpu_custom_call.1} parent=35 // pred_region
          %242 = dma.done %s234, 64
        $region48: #{tpu_custom_call.1} parent=35 // pred_fallthru
          _
        %s243 = sand.u32 %s22, 1
        %s244 = scalar_lea.sflag [#allocation3], %s243
        %s245 = sand.u32 %s30, 1
        %s246 = smul.addr %s245, 4
        %s247 = scalar_lea.vmem [#allocation2], %s246
        %p248 = pneg %p43
        %p249 = pneg %p40
        %p250 = pneg %p64
        %p251 = pneg %p61
        %p252 = pneg %p85
        %p253 = pneg %p82
        %s254 = sand.u32 %s22, 1
        %s255 = scalar_lea.sflag [#allocation3], %s254
        %s256 = sand.u32 %s98, 1
        %s257 = smul.addr %s256, 4
        %s258 = scalar_lea.vmem [#allocation7], %s257
        %p259 = pneg %p111
        %p260 = pneg %p108
        %p261 = pneg %p137
        %p262 = pneg %p134
        %s263 = sand.u32 %s124, 1
        %s264 = scalar_lea.sflag [#allocation4], %s263
        %s265 = sand.u32 %s124, 1
        %s266 = smul.addr %s265, 8
        %s267 = scalar_lea.vmem [#allocation8], %s266
        %v268 = vld [vmem:[%s222] sm:$0xf]
        %v269 = vld [vmem:[#allocation5] sm:$0xf]
        %v270 = vld [vmem:[#allocation5 + $0x4] sm:$0xf]
        %v271 = vld [vmem:[#allocation5 + $0x8] sm:$0xf]
        %v272 = vld [vmem:[#allocation5 + $0xc] sm:$0xf]
        %v273 = vld [vmem:[#allocation5 + $0x10] sm:$0xf]
        %v274 = vld [vmem:[#allocation5 + $0x14] sm:$0xf]
        %v275 = vld [vmem:[#allocation5 + $0x18] sm:$0xf]
        %v276 = vld [vmem:[#allocation5 + $0x1c] sm:$0xf]
        %v277 = vld [vmem:[#allocation5 + $0x20] sm:$0xf]
        %v278 = vld [vmem:[#allocation5 + $0x24] sm:$0xf]
        %v279 = vld [vmem:[#allocation5 + $0x28] sm:$0xf]
        %v280 = vld [vmem:[#allocation5 + $0x2c] sm:$0xf]
        %v281 = vld [vmem:[#allocation5 + $0x30] sm:$0xf]
        %v282 = vld [vmem:[#allocation5 + $0x34] sm:$0xf]
        %v283 = vld [vmem:[#allocation5 + $0x38] sm:$0xf]
        %v284 = vld [vmem:[#allocation5 + $0x3c] sm:$0xf]
        %v285 = vld [vmem:[%s2] sm:$0x1]
        %v287 = vperm.slane %v285, 0
        %v305 = vunpack.c.l.b16 %v269
        %v306 = vunpack.c.l.b16 %v270
        %v307 = vunpack.c.l.b16 %v271
        %v308 = vunpack.c.l.b16 %v272
        %v309 = vunpack.c.l.b16 %v273
        %v310 = vunpack.c.l.b16 %v274
        %v311 = vunpack.c.l.b16 %v275
        %v312 = vunpack.c.l.b16 %v276
        %v313 = vunpack.c.l.b16 %v277
        %v314 = vunpack.c.l.b16 %v278
        %v315 = vunpack.c.l.b16 %v279
        %v316 = vunpack.c.l.b16 %v280
        %v317 = vunpack.c.l.b16 %v281
        %v318 = vunpack.c.l.b16 %v282
        %v319 = vunpack.c.l.b16 %v283
        %v320 = vunpack.c.l.b16 %v284
        %v321 = vpack.c.b16 %v306, %v305
        %v322 = vpack.c.b16 %v308, %v307
        %v323 = vpack.c.b16 %v310, %v309
        %v324 = vpack.c.b16 %v312, %v311
        %v325 = vpack.c.b16 %v314, %v313
        %v326 = vpack.c.b16 %v316, %v315
        %v327 = vpack.c.b16 %v318, %v317
        %v328 = vpack.c.b16 %v320, %v319
        %337 = vmatpush.bf16.msra.mxu0 %v328
        %338 = vmatpush.bf16.msra.mxu0 %v327
        %339 = vmatpush.bf16.msra.mxu0 %v326
        %340 = vmatpush.bf16.msra.mxu0 %v325
        %341 = vmatpush.bf16.msra.mxu0 %v324
        %342 = vmatpush.bf16.msra.mxu0 %v323
        %343 = vmatpush.bf16.msra.mxu0 %v322
        %344 = vmatpush.bf16.msra.mxu0 %v321
        %345 = vmatmul.bf16.gmra.mxu0 %v268
        %v346 = vpop.f32.mrf.mxu0
        %v347 = vadd.f32 %v287, %v346
        %v348 = vpop.f32.mrf.mxu0
        %349 = vdwg.mxu0
        %v350 = vld [vmem:[%s237] sm:$0xf]
        %v351 = vunpack.c.l.bf16 %v350
        %v352 = vmul.f32 %v351, 0.1
        %v353 = vadd.f32 %v347, %v352
        %354 = vst [vmem:[%s267] sm:$0xff] %v353
        %s355 = sand.u32 %s124, 1
        %s356 = scalar_lea.sflag [#allocation4], %s355
        %s357 = sand.u32 %s124, 1
        %s358 = smul.addr %s357, 8
        %s359 = scalar_lea.vmem [#allocation8], %s358
        // Predicated region
        $region49: #{tpu_custom_call.1} parent=35 // pred_check
          %p360 = pneg %p134
        $region50: #{tpu_custom_call.1} parent=35 // pred_check_branch
          %362 = sbr.rel (%p360) target = $region52
        $region51: #{tpu_custom_call.1} parent=35 // pred_region
          %364 = vsyncadd %s356, 0
          %s365 = smul.addr %s22, 8
          %s366 = scalar_lea.hbm %s4, %s365
          %s368 = sshll.u32 %s359, 4
          %s369 = int_to_ptr.vmem [resolvable:$true] %s368
          %s370 = sshll.u32 %s366, 4
          %s371 = int_to_ptr.hbm [resolvable:$true] %s370
          %373 = dma.vmem_to_hbm [thread:$0]  %s369, 128, %s371, %s356
        $region52: #{tpu_custom_call.1} parent=35 // pred_fallthru
          _
      $region36: #{tpu_custom_call.1} parent=5 // pred_fallthru
        _
      %p374 = scmp.le.s32.totalorder 2, %s17
      // Predicated region
      $region53: #{tpu_custom_call.1} parent=5 // pred_check
        %p375 = pneg %p374
      $region54: #{tpu_custom_call.1} parent=5 // pred_check_branch
        %377 = sbr.rel (%p375) target = $region56
      $region55: #{tpu_custom_call.1} parent=5 // pred_region
        %s378 = ssub.s32 %s17, 2
        // Predicated region
        $region57: #{tpu_custom_call.1} parent=55 // pred_check
          %p379 = pneg %p140
        $region58: #{tpu_custom_call.1} parent=55 // pred_check_branch
          %381 = sbr.rel (%p379) target = $region60
        $region59: #{tpu_custom_call.1} parent=55 // pred_region
          %s382 = sand.u32 %s125, 1
          %s383 = scalar_lea.sflag [#allocation4], %s382
          %s384 = sand.u32 %s125, 1
          %s385 = smul.addr %s384, 8
          %s386 = scalar_lea.vmem [#allocation8], %s385
          %388 = dma.done %s383, 128
        $region60: #{tpu_custom_call.1} parent=55 // pred_fallthru
          _
      $region56: #{tpu_custom_call.1} parent=5 // pred_fallthru
        _
    $region6: #{tpu_custom_call.1} parent=1 // loop_footer
      %s21 = sadd.s32 1, %s17
    $region7: #{tpu_custom_call.1} parent=1 // loop_footer_branch
      %16 = sbr.rel target = $region3
    $region8: #{tpu_custom_call.1} parent=1 // loop_exit
      _
    %389 = vsyncpa [#allocation3], 1
    %s390 = scalar_lea.sflag [#allocation3], 1
    %391 = vsyncpa %s390, 1
    %392 = vsyncpa [#allocation6], 1
    %393 = vsyncpa [#allocation4], 1
    %s394 = scalar_lea.sflag [#allocation4], 1
    %395 = vsyncpa %s394, 1

</llo_original>
